<compile_context>
chip_gen: v6e
topology: v6e:2x2x1
jax: 0.10.0
libtpu: 0.0.40
codegen_flags: <defaults>
</compile_context>

<pallas_src>
import jax
import jax.numpy as jnp
import numpy as np
from jax.experimental import pallas as pl
from jax.experimental.pallas import tpu as pltpu

# ---------------- model hyper-parameters (small, consistent with the module) ---
VOCAB_SIZE = 3          # len({'<PAD>', '<SOS>', '<EOS>'})
EMBED_DIM = 32          # embedding_dim (small stand-in for 128)
NUM_LAYERS = 2
BATCH = 2
SEQ_LEN = 8
LN_EPS = 1e-5           # PyTorch nn.LayerNorm default
LANES = 128             # 128-lane tile width for padded, lane-dense operands


# ----------------------------- LayerNorm helpers --------------------------------
def _layer_norm(x, gamma, beta, eps=LN_EPS):
    # two-pass (mean, then centered variance): robust vs E[x^2]-E[x]^2 cancellation
    mu = jnp.mean(x, axis=-1, keepdims=True)
    xc = x - mu
    var = jnp.mean(xc * xc, axis=-1, keepdims=True)
    return xc * jax.lax.rsqrt(var + eps) * gamma + beta


def _layer_norm_ref(x, gamma, beta, eps=LN_EPS):
    mu = jnp.mean(x, axis=-1, keepdims=True)
    var = jnp.mean((x - mu) ** 2, axis=-1, keepdims=True)
    return (x - mu) * jax.lax.rsqrt(var + eps) * gamma + beta


# --------------------------------- kernel --------------------------------------
def decoder_kernel(x_ref, enc_ref, pb_ref, wrv_ref, fc_ref, out_ref):
    # x_ref : (S*B, D)   token embeddings, rows ordered time-major (t, b)
    # enc_ref: (B, D)    encoder context
    # pb_ref : (L, 8, D) packed per-layer params
    #          rows: 0 time_mod, 1 ctx_mod, 2 ln1_g, 3 ln1_b, 4 ln2_g, 5 ln2_b, 6 br, 7 bv
    # wrv_ref: (L, D, 2*LANES) fused gate/value weight, gate @ lanes 0..D-1 of tile 0,
    #          value @ lanes 0..D-1 of tile 1 (zero-padded, tile-aligned split)
    # fc_ref : (D+8, LANES)    rows 0..D-1 = fc weight, row D = fc bias (lane-padded)
    # out_ref: (B, LANES)      lane-dense padded logits
    x = x_ref[...]
    enc = enc_ref[...]
    SB, D = x_ref.shape
    B = enc_ref.shape[0]
    S = SB // B
    L = pb_ref.shape[0]

    for l in range(L):                       # static unroll over layers (L=2)
        pb = pb_ref[l]                       # (8, D) one load per layer
        tm, cm = pb[0], pb[1]
        ln1g, ln1b = pb[2], pb[3]
        ln2g, ln2b = pb[4], pb[5]
        br, bv = pb[6], pb[7]

        shifted = x                          # x_prev=None -> shift is identity

        # encoder-context contribution (constant across timesteps)
        ctx_add = jax.nn.sigmoid(enc * cm) * enc                 # (B, D)

        # ---- hoisted, step-independent math over the whole (S*B, D) block ----
        decay = jax.nn.sigmoid(shifted * tm)                     # (S*B, D)
        e_c = jnp.exp(shifted)                                   # (S*B, D)
        # NOTE: exp is unguarded (inherited from the reference formulation); a
        # max-subtraction would change the b/(a+1e-8) semantics, so it is kept.
        num = e_c * shifted                                      # (S*B, D)
        mean_decay = jnp.mean(decay, axis=-1, keepdims=True)     # (S*B, 1)
        sum_ec = jnp.sum(e_c, axis=-1, keepdims=True)            # (S*B, 1)

        # ---- SequenceMergingSeq recurrence: register-resident a/b histories ----
        # S=8 -> static unroll; per step: 2 FMAs + 1 add on (B, D) values.
        a = jnp.zeros((B, 1), jnp.float32)
        b = jnp.zeros((B, D), jnp.float32)
        a_hist, b_hist = [], []
        for t in range(S):
            r0 = t * B                                           # contiguous rows
            a = mean_decay[r0:r0 + B, :] * a + sum_ec[r0:r0 + B, :]
            b = decay[r0:r0 + B, :] * b + num[r0:r0 + B, :] + ctx_add
            a_hist.append(a)
            b_hist.append(b)

        a_all = jnp.concatenate(a_hist, axis=0)                  # (S*B, 1)
        b_all = jnp.concatenate(b_hist, axis=0)                  # (S*B, D)

        # deferred divide: one bulk exact reciprocal (do NOT use approx=True here)
        merged = b_all * pl.reciprocal(a_all + 1e-8)             # (S*B, D)
        merged = _layer_norm(merged, ln1g, ln1b)

        # ---- StateCoupling: one fused (S*B, D) x (D, 2*LANES) MXU matmul ----
        proj = jnp.dot(merged, wrv_ref[l],
                       preferred_element_type=jnp.float32)       # (S*B, 2*LANES)
        gate = jax.nn.sigmoid(proj[:, :D] + br)                  # tile-0 slice
        value = proj[:, LANES:LANES + D] + bv                    # tile-1 slice
        x = shifted + _layer_norm(gate * value, ln2g, ln2b)

    # final projection on the last timestep -> lane-dense padded (B, LANES) logits
    fc = fc_ref[...]
    last = x[(S - 1) * B:, :]                                    # (B, D), contiguous
    out_ref[...] = jnp.dot(last, fc[:D, :],
                           preferred_element_type=jnp.float32) + fc[D, :]


# ------------------- one-time host-side parameter preprocessing -----------------
def preprocess_params(params):
    """Pack / pad all weights ONCE at init; nothing here runs in the forward path."""
    D, V, L = EMBED_DIM, VOCAB_SIZE, NUM_LAYERS

    # (L, 8, D) packed per-layer parameter block
    pblock = jnp.stack(
        [params['time_mod'], params['ctx_mod'],
         params['ln1_g'], params['ln1_b'],
         params['ln2_g'], params['ln2_b'],
         params['br'], params['bv']], axis=1).astype(jnp.float32)

    # fused gate/value weight, padded so the gate/value split is 128-lane aligned
    wrv = jnp.zeros((L, D, 2 * LANES), jnp.float32)
    wrv = wrv.at[:, :, :D].set(params['wr_T'])
    wrv = wrv.at[:, :, LANES:LANES + D].set(params['wv_T'])

    # fc weight + bias packed into one lane-dense block (rows 0..D-1 = W, row D = b)
    fc = jnp.zeros((D + 8, LANES), jnp.float32)
    fc = fc.at[:D, :V].set(params['fc_w_T'])
    fc = fc.at[D, :V].set(params['fc_b'][0])

    return {'embedding': params['embedding'].astype(jnp.float32),
            'pblock': pblock, 'wrv': wrv, 'fc': fc}


# --------------------------------- wrapper -------------------------------------
def attention_stream_decoder(tokens, encoder_output, packed):
    B, S = tokens.shape
    D = EMBED_DIM
    # embedding gather directly in time-major order, flattened once to (S*B, D)
    x_flat = packed['embedding'][tokens.T].reshape(S * B, D)     # (S*B, D) f32

    vmem = pl.BlockSpec(memory_space=pltpu.MemorySpace.VMEM)
    logits_pad = pl.pallas_call(
        decoder_kernel,
        out_shape=jax.ShapeDtypeStruct((B, LANES), jnp.float32),
        in_specs=[vmem] * 5,
        out_specs=vmem,
    )(x_flat, encoder_output, packed['pblock'], packed['wrv'], packed['fc'])
    return logits_pad[:, :VOCAB_SIZE]


# ---------------------------- pure-JAX reference --------------------------------
def reference_forward(tokens, encoder_output, params):
    x = params['embedding'][tokens]
    enc = encoder_output
    B, S, D = x.shape
    for l in range(NUM_LAYERS):
        shifted = x
        tm = params['time_mod'][l]
        cm = params['ctx_mod'][l]
        a = jnp.zeros((B, 1))
        b = jnp.zeros((B, D))
        outs = []
        for t in range(S):
            c_t = shifted[:, t, :]
            decay = jax.nn.sigmoid(c_t * tm[None, :])
            e_c = jnp.exp(c_t)
            a = jnp.mean(decay, axis=1, keepdims=True) * a \
                + jnp.sum(e_c, axis=1, keepdims=True)
            b = decay * b + e_c * c_t
            cw = jax.nn.sigmoid(enc * cm[None, :])
            b = b + cw * enc
            outs.append(b / (a + 1e-8))
        merged = jnp.stack(outs, axis=1)
        merged = _layer_norm_ref(merged, params['ln1_g'][l], params['ln1_b'][l])
        gate = jax.nn.sigmoid(merged @ params['wr_T'][l] + params['br'][l])
        value = merged @ params['wv_T'][l] + params['bv'][l]
        coupled = _layer_norm_ref(gate * value, params['ln2_g'][l], params['ln2_b'][l])
        x = shifted + coupled
    return x[:, -1, :] @ params['fc_w_T'] + params['fc_b'][0]


# ------------------------------ parameter init ----------------------------------
def init_params(key):
    D, V, L = EMBED_DIM, VOCAB_SIZE, NUM_LAYERS
    ks = jax.random.split(key, 8)
    lim = 1.0 / np.sqrt(D)
    return {
        'embedding': jax.random.normal(ks[0], (V, D), jnp.float32),
        # module __init__: time/context modulation = 0.5, layernorms = (1, 0)
        'time_mod': jnp.full((L, D), 0.5, jnp.float32),
        'ctx_mod': jnp.full((L, D), 0.5, jnp.float32),
        'ln1_g': jnp.ones((L, D), jnp.float32),
        'ln1_b': jnp.zeros((L, D), jnp.float32),
        'ln2_g': jnp.ones((L, D), jnp.float32),
        'ln2_b': jnp.zeros((L, D), jnp.float32),
        # Linear weights pre-transposed so the kernel computes x @ W^T as x @ W_T
        'wr_T': jax.random.uniform(ks[1], (L, D, D), jnp.float32, -lim, lim),
        'br': jax.random.uniform(ks[2], (L, D), jnp.float32, -lim, lim),
        'wv_T': jax.random.uniform(ks[3], (L, D, D), jnp.float32, -lim, lim),
        'bv': jax.random.uniform(ks[4], (L, D), jnp.float32, -lim, lim),
        'fc_w_T': jax.random.uniform(ks[5], (D, V), jnp.float32, -lim, lim),
        'fc_b': jax.random.uniform(ks[6], (1, V), jnp.float32, -lim, lim),
    }


if __name__ == "__main__":
    key = jax.random.PRNGKey(0)
    k_par, k_tok, k_enc = jax.random.split(key, 3)

    params = init_params(k_par)
    packed = preprocess_params(params)        # one-time weight packing (not per-call)

    tokens = jax.random.randint(k_tok, (BATCH, SEQ_LEN), 0, VOCAB_SIZE)   # (B, S) ids
    encoder_output = jax.random.normal(k_enc, (BATCH, EMBED_DIM), jnp.float32)

    forward = jax.jit(attention_stream_decoder)
    out = jax.block_until_ready(forward(tokens, encoder_output, packed))

    ref = reference_forward(tokens, encoder_output, params)
    assert out.shape == (BATCH, VOCAB_SIZE)
    assert np.allclose(np.asarray(out), np.asarray(ref), rtol=1e-4, atol=1e-4), \
        "Pallas kernel mismatch vs JAX reference"

    print("KERNEL_OK")
</pallas_src>

<mosaic_0001>
module attributes {stable_mosaic.version = 11 : i64} {
  func.func @decoder_kernel(%arg0: memref<16x32xf32, #tpu.memory_space<vmem>>, %arg1: memref<2x32xf32, #tpu.memory_space<vmem>>, %arg2: memref<2x8x32xf32, #tpu.memory_space<vmem>>, %arg3: memref<2x32x256xf32, #tpu.memory_space<vmem>>, %arg4: memref<40x128xf32, #tpu.memory_space<vmem>>, %arg5: memref<2x128xf32, #tpu.memory_space<vmem>>) attributes {dimension_semantics = [], scalar_prefetch = 0 : i64, scratch_operands = 0 : i64, tpu.core_type = #tpu.core_type<tc>} {
    %c0 = arith.constant 0 : index
    %c0_0 = arith.constant 0 : index
    %0 = vector.load %arg0[%c0, %c0_0] : memref<16x32xf32, #tpu.memory_space<vmem>>, vector<16x32xf32>
    %c0_1 = arith.constant 0 : index
    %c0_2 = arith.constant 0 : index
    %1 = vector.load %arg1[%c0_1, %c0_2] : memref<2x32xf32, #tpu.memory_space<vmem>>, vector<2x32xf32>
    %c0_3 = arith.constant 0 : index
    %c0_4 = arith.constant 0 : index
    %c0_5 = arith.constant 0 : index
    %2 = vector.load %arg2[%c0_3, %c0_4, %c0_5] : memref<2x8x32xf32, #tpu.memory_space<vmem>>, vector<1x8x32xf32>
    %3 = vector.shape_cast %2 : vector<1x8x32xf32> to vector<8x32xf32>
    %4 = vector.extract_strided_slice %3 {offsets = [0, 0], sizes = [1, 32], strides = [1, 1]} : vector<8x32xf32> to vector<1x32xf32>
    %5 = vector.shape_cast %4 : vector<1x32xf32> to vector<32xf32>
    %6 = vector.extract_strided_slice %3 {offsets = [1, 0], sizes = [1, 32], strides = [1, 1]} : vector<8x32xf32> to vector<1x32xf32>
    %7 = vector.shape_cast %6 : vector<1x32xf32> to vector<32xf32>
    %8 = vector.extract_strided_slice %3 {offsets = [2, 0], sizes = [1, 32], strides = [1, 1]} : vector<8x32xf32> to vector<1x32xf32>
    %9 = vector.shape_cast %8 : vector<1x32xf32> to vector<32xf32>
    %10 = vector.extract_strided_slice %3 {offsets = [3, 0], sizes = [1, 32], strides = [1, 1]} : vector<8x32xf32> to vector<1x32xf32>
    %11 = vector.shape_cast %10 : vector<1x32xf32> to vector<32xf32>
    %12 = vector.extract_strided_slice %3 {offsets = [4, 0], sizes = [1, 32], strides = [1, 1]} : vector<8x32xf32> to vector<1x32xf32>
    %13 = vector.shape_cast %12 : vector<1x32xf32> to vector<32xf32>
    %14 = vector.extract_strided_slice %3 {offsets = [5, 0], sizes = [1, 32], strides = [1, 1]} : vector<8x32xf32> to vector<1x32xf32>
    %15 = vector.shape_cast %14 : vector<1x32xf32> to vector<32xf32>
    %16 = vector.extract_strided_slice %3 {offsets = [6, 0], sizes = [1, 32], strides = [1, 1]} : vector<8x32xf32> to vector<1x32xf32>
    %17 = vector.shape_cast %16 : vector<1x32xf32> to vector<32xf32>
    %18 = vector.extract_strided_slice %3 {offsets = [7, 0], sizes = [1, 32], strides = [1, 1]} : vector<8x32xf32> to vector<1x32xf32>
    %19 = vector.shape_cast %18 : vector<1x32xf32> to vector<32xf32>
    %20 = vector.shape_cast %7 : vector<32xf32> to vector<1x32xf32>
    %21 = vector.broadcast %20 : vector<1x32xf32> to vector<2x32xf32>
    %22 = arith.mulf %1, %21 : vector<2x32xf32>
    %23 = arith.negf %22 : vector<2x32xf32>
    %24 = math.exp %23 : vector<2x32xf32>
    %cst = arith.constant 1.000000e+00 : f32
    %25 = vector.broadcast %cst : f32 to vector<2x32xf32>
    %26 = arith.addf %25, %24 : vector<2x32xf32>
    %27 = arith.divf %25, %26 : vector<2x32xf32>
    %28 = arith.mulf %27, %1 : vector<2x32xf32>
    %29 = vector.shape_cast %5 : vector<32xf32> to vector<1x32xf32>
    %30 = vector.broadcast %29 : vector<1x32xf32> to vector<16x32xf32>
    %31 = arith.mulf %0, %30 : vector<16x32xf32>
    %32 = arith.negf %31 : vector<16x32xf32>
    %33 = math.exp %32 : vector<16x32xf32>
    %cst_6 = arith.constant 1.000000e+00 : f32
    %34 = vector.broadcast %cst_6 : f32 to vector<16x32xf32>
    %35 = arith.addf %34, %33 : vector<16x32xf32>
    %36 = arith.divf %34, %35 : vector<16x32xf32>
    %37 = math.exp %0 : vector<16x32xf32>
    %38 = arith.mulf %37, %0 : vector<16x32xf32>
    %cst_7 = arith.constant dense<0.000000e+00> : vector<16xf32>
    %39 = vector.multi_reduction <add>, %36, %cst_7 [1] : vector<16x32xf32> to vector<16xf32>
    %40 = vector.shape_cast %39 : vector<16xf32> to vector<16x1xf32>
    %cst_8 = arith.constant 3.200000e+01 : f32
    %41 = vector.broadcast %cst_8 : f32 to vector<16x1xf32>
    %42 = arith.divf %40, %41 : vector<16x1xf32>
    %cst_9 = arith.constant dense<0.000000e+00> : vector<16xf32>
    %43 = vector.multi_reduction <add>, %37, %cst_9 [1] : vector<16x32xf32> to vector<16xf32>
    %44 = vector.shape_cast %43 : vector<16xf32> to vector<16x1xf32>
    %cst_10 = arith.constant 0.000000e+00 : f32
    %45 = vector.broadcast %cst_10 : f32 to vector<2x1xf32>
    %cst_11 = arith.constant 0.000000e+00 : f32
    %46 = vector.broadcast %cst_11 : f32 to vector<2x32xf32>
    %47 = vector.extract_strided_slice %42 {offsets = [0, 0], sizes = [2, 1], strides = [1, 1]} : vector<16x1xf32> to vector<2x1xf32>
    %48 = arith.mulf %47, %45 : vector<2x1xf32>
    %49 = vector.extract_strided_slice %44 {offsets = [0, 0], sizes = [2, 1], strides = [1, 1]} : vector<16x1xf32> to vector<2x1xf32>
    %50 = arith.addf %48, %49 : vector<2x1xf32>
    %51 = vector.extract_strided_slice %36 {offsets = [0, 0], sizes = [2, 32], strides = [1, 1]} : vector<16x32xf32> to vector<2x32xf32>
    %52 = arith.mulf %51, %46 : vector<2x32xf32>
    %53 = vector.extract_strided_slice %38 {offsets = [0, 0], sizes = [2, 32], strides = [1, 1]} : vector<16x32xf32> to vector<2x32xf32>
    %54 = arith.addf %52, %53 : vector<2x32xf32>
    %55 = arith.addf %54, %28 : vector<2x32xf32>
    %56 = vector.extract_strided_slice %42 {offsets = [2, 0], sizes = [2, 1], strides = [1, 1]} : vector<16x1xf32> to vector<2x1xf32>
    %57 = arith.mulf %56, %50 : vector<2x1xf32>
    %58 = vector.extract_strided_slice %44 {offsets = [2, 0], sizes = [2, 1], strides = [1, 1]} : vector<16x1xf32> to vector<2x1xf32>
    %59 = arith.addf %57, %58 : vector<2x1xf32>
    %60 = vector.extract_strided_slice %36 {offsets = [2, 0], sizes = [2, 32], strides = [1, 1]} : vector<16x32xf32> to vector<2x32xf32>
    %61 = arith.mulf %60, %55 : vector<2x32xf32>
    %62 = vector.extract_strided_slice %38 {offsets = [2, 0], sizes = [2, 32], strides = [1, 1]} : vector<16x32xf32> to vector<2x32xf32>
    %63 = arith.addf %61, %62 : vector<2x32xf32>
    %64 = arith.addf %63, %28 : vector<2x32xf32>
    %65 = vector.extract_strided_slice %42 {offsets = [4, 0], sizes = [2, 1], strides = [1, 1]} : vector<16x1xf32> to vector<2x1xf32>
    %66 = arith.mulf %65, %59 : vector<2x1xf32>
    %67 = vector.extract_strided_slice %44 {offsets = [4, 0], sizes = [2, 1], strides = [1, 1]} : vector<16x1xf32> to vector<2x1xf32>
    %68 = arith.addf %66, %67 : vector<2x1xf32>
    %69 = vector.extract_strided_slice %36 {offsets = [4, 0], sizes = [2, 32], strides = [1, 1]} : vector<16x32xf32> to vector<2x32xf32>
    %70 = arith.mulf %69, %64 : vector<2x32xf32>
    %71 = vector.extract_strided_slice %38 {offsets = [4, 0], sizes = [2, 32], strides = [1, 1]} : vector<16x32xf32> to vector<2x32xf32>
    %72 = arith.addf %70, %71 : vector<2x32xf32>
    %73 = arith.addf %72, %28 : vector<2x32xf32>
    %74 = vector.extract_strided_slice %42 {offsets = [6, 0], sizes = [2, 1], strides = [1, 1]} : vector<16x1xf32> to vector<2x1xf32>
    %75 = arith.mulf %74, %68 : vector<2x1xf32>
    %76 = vector.extract_strided_slice %44 {offsets = [6, 0], sizes = [2, 1], strides = [1, 1]} : vector<16x1xf32> to vector<2x1xf32>
    %77 = arith.addf %75, %76 : vector<2x1xf32>
    %78 = vector.extract_strided_slice %36 {offsets = [6, 0], sizes = [2, 32], strides = [1, 1]} : vector<16x32xf32> to vector<2x32xf32>
    %79 = arith.mulf %78, %73 : vector<2x32xf32>
    %80 = vector.extract_strided_slice %38 {offsets = [6, 0], sizes = [2, 32], strides = [1, 1]} : vector<16x32xf32> to vector<2x32xf32>
    %81 = arith.addf %79, %80 : vector<2x32xf32>
    %82 = arith.addf %81, %28 : vector<2x32xf32>
    %83 = vector.extract_strided_slice %42 {offsets = [8, 0], sizes = [2, 1], strides = [1, 1]} : vector<16x1xf32> to vector<2x1xf32>
    %84 = arith.mulf %83, %77 : vector<2x1xf32>
    %85 = vector.extract_strided_slice %44 {offsets = [8, 0], sizes = [2, 1], strides = [1, 1]} : vector<16x1xf32> to vector<2x1xf32>
    %86 = arith.addf %84, %85 : vector<2x1xf32>
    %87 = vector.extract_strided_slice %36 {offsets = [8, 0], sizes = [2, 32], strides = [1, 1]} : vector<16x32xf32> to vector<2x32xf32>
    %88 = arith.mulf %87, %82 : vector<2x32xf32>
    %89 = vector.extract_strided_slice %38 {offsets = [8, 0], sizes = [2, 32], strides = [1, 1]} : vector<16x32xf32> to vector<2x32xf32>
    %90 = arith.addf %88, %89 : vector<2x32xf32>
    %91 = arith.addf %90, %28 : vector<2x32xf32>
    %92 = vector.extract_strided_slice %42 {offsets = [10, 0], sizes = [2, 1], strides = [1, 1]} : vector<16x1xf32> to vector<2x1xf32>
    %93 = arith.mulf %92, %86 : vector<2x1xf32>
    %94 = vector.extract_strided_slice %44 {offsets = [10, 0], sizes = [2, 1], strides = [1, 1]} : vector<16x1xf32> to vector<2x1xf32>
    %95 = arith.addf %93, %94 : vector<2x1xf32>
    %96 = vector.extract_strided_slice %36 {offsets = [10, 0], sizes = [2, 32], strides = [1, 1]} : vector<16x32xf32> to vector<2x32xf32>
    %97 = arith.mulf %96, %91 : vector<2x32xf32>
    %98 = vector.extract_strided_slice %38 {offsets = [10, 0], sizes = [2, 32], strides = [1, 1]} : vector<16x32xf32> to vector<2x32xf32>
    %99 = arith.addf %97, %98 : vector<2x32xf32>
    %100 = arith.addf %99, %28 : vector<2x32xf32>
    %101 = vector.extract_strided_slice %42 {offsets = [12, 0], sizes = [2, 1], strides = [1, 1]} : vector<16x1xf32> to vector<2x1xf32>
    %102 = arith.mulf %101, %95 : vector<2x1xf32>
    %103 = vector.extract_strided_slice %44 {offsets = [12, 0], sizes = [2, 1], strides = [1, 1]} : vector<16x1xf32> to vector<2x1xf32>
    %104 = arith.addf %102, %103 : vector<2x1xf32>
    %105 = vector.extract_strided_slice %36 {offsets = [12, 0], sizes = [2, 32], strides = [1, 1]} : vector<16x32xf32> to vector<2x32xf32>
    %106 = arith.mulf %105, %100 : vector<2x32xf32>
    %107 = vector.extract_strided_slice %38 {offsets = [12, 0], sizes = [2, 32], strides = [1, 1]} : vector<16x32xf32> to vector<2x32xf32>
    %108 = arith.addf %106, %107 : vector<2x32xf32>
    %109 = arith.addf %108, %28 : vector<2x32xf32>
    %110 = vector.extract_strided_slice %42 {offsets = [14, 0], sizes = [2, 1], strides = [1, 1]} : vector<16x1xf32> to vector<2x1xf32>
    %111 = arith.mulf %110, %104 : vector<2x1xf32>
    %112 = vector.extract_strided_slice %44 {offsets = [14, 0], sizes = [2, 1], strides = [1, 1]} : vector<16x1xf32> to vector<2x1xf32>
    %113 = arith.addf %111, %112 : vector<2x1xf32>
    %114 = vector.extract_strided_slice %36 {offsets = [14, 0], sizes = [2, 32], strides = [1, 1]} : vector<16x32xf32> to vector<2x32xf32>
    %115 = arith.mulf %114, %109 : vector<2x32xf32>
    %116 = vector.extract_strided_slice %38 {offsets = [14, 0], sizes = [2, 32], strides = [1, 1]} : vector<16x32xf32> to vector<2x32xf32>
    %117 = arith.addf %115, %116 : vector<2x32xf32>
    %118 = arith.addf %117, %28 : vector<2x32xf32>
    %119 = tpu.concatenate %50, %59, %68, %77, %86, %95, %104, %113 in 0 : vector<2x1xf32>, vector<2x1xf32>, vector<2x1xf32>, vector<2x1xf32>, vector<2x1xf32>, vector<2x1xf32>, vector<2x1xf32>, vector<2x1xf32> -> vector<16x1xf32>
    %120 = tpu.concatenate %55, %64, %73, %82, %91, %100, %109, %118 in 0 : vector<2x32xf32>, vector<2x32xf32>, vector<2x32xf32>, vector<2x32xf32>, vector<2x32xf32>, vector<2x32xf32>, vector<2x32xf32>, vector<2x32xf32> -> vector<16x32xf32>
    %cst_12 = arith.constant 9.99999993E-9 : f32
    %121 = vector.broadcast %cst_12 : f32 to vector<16x1xf32>
    %122 = arith.addf %119, %121 : vector<16x1xf32>
    %123 = tpu.reciprocal %122 : vector<16x1xf32> -> vector<16x1xf32>
    %124 = vector.broadcast %123 : vector<16x1xf32> to vector<16x32xf32>
    %125 = arith.mulf %120, %124 : vector<16x32xf32>
    %cst_13 = arith.constant dense<0.000000e+00> : vector<16xf32>
    %126 = vector.multi_reduction <add>, %125, %cst_13 [1] : vector<16x32xf32> to vector<16xf32>
    %127 = vector.shape_cast %126 : vector<16xf32> to vector<16x1xf32>
    %cst_14 = arith.constant 3.200000e+01 : f32
    %128 = vector.broadcast %cst_14 : f32 to vector<16x1xf32>
    %129 = arith.divf %127, %128 : vector<16x1xf32>
    %130 = vector.broadcast %129 : vector<16x1xf32> to vector<16x32xf32>
    %131 = arith.subf %125, %130 : vector<16x32xf32>
    %132 = arith.mulf %131, %131 : vector<16x32xf32>
    %cst_15 = arith.constant dense<0.000000e+00> : vector<16xf32>
    %133 = vector.multi_reduction <add>, %132, %cst_15 [1] : vector<16x32xf32> to vector<16xf32>
    %134 = vector.shape_cast %133 : vector<16xf32> to vector<16x1xf32>
    %cst_16 = arith.constant 3.200000e+01 : f32
    %135 = vector.broadcast %cst_16 : f32 to vector<16x1xf32>
    %136 = arith.divf %134, %135 : vector<16x1xf32>
    %cst_17 = arith.constant 9.99999974E-6 : f32
    %137 = vector.broadcast %cst_17 : f32 to vector<16x1xf32>
    %138 = arith.addf %136, %137 : vector<16x1xf32>
    %139 = math.rsqrt %138 : vector<16x1xf32>
    %140 = vector.broadcast %139 : vector<16x1xf32> to vector<16x32xf32>
    %141 = arith.mulf %131, %140 : vector<16x32xf32>
    %142 = vector.shape_cast %9 : vector<32xf32> to vector<1x32xf32>
    %143 = vector.broadcast %142 : vector<1x32xf32> to vector<16x32xf32>
    %144 = arith.mulf %141, %143 : vector<16x32xf32>
    %145 = vector.shape_cast %11 : vector<32xf32> to vector<1x32xf32>
    %146 = vector.broadcast %145 : vector<1x32xf32> to vector<16x32xf32>
    %147 = arith.addf %144, %146 : vector<16x32xf32>
    %c0_18 = arith.constant 0 : index
    %c0_19 = arith.constant 0 : index
    %c0_20 = arith.constant 0 : index
    %148 = vector.load %arg3[%c0_18, %c0_19, %c0_20] : memref<2x32x256xf32, #tpu.memory_space<vmem>>, vector<1x32x256xf32>
    %149 = vector.shape_cast %148 : vector<1x32x256xf32> to vector<32x256xf32>
    %cst_21 = arith.constant dense<0.000000e+00> : vector<16x256xf32>
    %150 = tpu.matmul %147, %149, %cst_21 {dimension_numbers = #tpu.dot_dimension_numbers<[1], [0], [0], [1], [0, 0, 1, 1], [], []>} : vector<16x32xf32>, vector<32x256xf32>, vector<16x256xf32> -> vector<16x256xf32>
    %151 = vector.extract_strided_slice %150 {offsets = [0, 0], sizes = [16, 32], strides = [1, 1]} : vector<16x256xf32> to vector<16x32xf32>
    %152 = vector.shape_cast %17 : vector<32xf32> to vector<1x32xf32>
    %153 = vector.broadcast %152 : vector<1x32xf32> to vector<16x32xf32>
    %154 = arith.addf %151, %153 : vector<16x32xf32>
    %155 = arith.negf %154 : vector<16x32xf32>
    %156 = math.exp %155 : vector<16x32xf32>
    %cst_22 = arith.constant 1.000000e+00 : f32
    %157 = vector.broadcast %cst_22 : f32 to vector<16x32xf32>
    %158 = arith.addf %157, %156 : vector<16x32xf32>
    %159 = arith.divf %157, %158 : vector<16x32xf32>
    %160 = vector.extract_strided_slice %150 {offsets = [0, 128], sizes = [16, 32], strides = [1, 1]} : vector<16x256xf32> to vector<16x32xf32>
    %161 = vector.shape_cast %19 : vector<32xf32> to vector<1x32xf32>
    %162 = vector.broadcast %161 : vector<1x32xf32> to vector<16x32xf32>
    %163 = arith.addf %160, %162 : vector<16x32xf32>
    %164 = arith.mulf %159, %163 : vector<16x32xf32>
    %cst_23 = arith.constant dense<0.000000e+00> : vector<16xf32>
    %165 = vector.multi_reduction <add>, %164, %cst_23 [1] : vector<16x32xf32> to vector<16xf32>
    %166 = vector.shape_cast %165 : vector<16xf32> to vector<16x1xf32>
    %cst_24 = arith.constant 3.200000e+01 : f32
    %167 = vector.broadcast %cst_24 : f32 to vector<16x1xf32>
    %168 = arith.divf %166, %167 : vector<16x1xf32>
    %169 = vector.broadcast %168 : vector<16x1xf32> to vector<16x32xf32>
    %170 = arith.subf %164, %169 : vector<16x32xf32>
    %171 = arith.mulf %170, %170 : vector<16x32xf32>
    %cst_25 = arith.constant dense<0.000000e+00> : vector<16xf32>
    %172 = vector.multi_reduction <add>, %171, %cst_25 [1] : vector<16x32xf32> to vector<16xf32>
    %173 = vector.shape_cast %172 : vector<16xf32> to vector<16x1xf32>
    %cst_26 = arith.constant 3.200000e+01 : f32
    %174 = vector.broadcast %cst_26 : f32 to vector<16x1xf32>
    %175 = arith.divf %173, %174 : vector<16x1xf32>
    %cst_27 = arith.constant 9.99999974E-6 : f32
    %176 = vector.broadcast %cst_27 : f32 to vector<16x1xf32>
    %177 = arith.addf %175, %176 : vector<16x1xf32>
    %178 = math.rsqrt %177 : vector<16x1xf32>
    %179 = vector.broadcast %178 : vector<16x1xf32> to vector<16x32xf32>
    %180 = arith.mulf %170, %179 : vector<16x32xf32>
    %181 = vector.shape_cast %13 : vector<32xf32> to vector<1x32xf32>
    %182 = vector.broadcast %181 : vector<1x32xf32> to vector<16x32xf32>
    %183 = arith.mulf %180, %182 : vector<16x32xf32>
    %184 = vector.shape_cast %15 : vector<32xf32> to vector<1x32xf32>
    %185 = vector.broadcast %184 : vector<1x32xf32> to vector<16x32xf32>
    %186 = arith.addf %183, %185 : vector<16x32xf32>
    %187 = arith.addf %0, %186 : vector<16x32xf32>
    %c1 = arith.constant 1 : index
    %c0_28 = arith.constant 0 : index
    %c0_29 = arith.constant 0 : index
    %188 = vector.load %arg2[%c1, %c0_28, %c0_29] : memref<2x8x32xf32, #tpu.memory_space<vmem>>, vector<1x8x32xf32>
    %189 = vector.shape_cast %188 : vector<1x8x32xf32> to vector<8x32xf32>
    %190 = vector.extract_strided_slice %189 {offsets = [0, 0], sizes = [1, 32], strides = [1, 1]} : vector<8x32xf32> to vector<1x32xf32>
    %191 = vector.shape_cast %190 : vector<1x32xf32> to vector<32xf32>
    %192 = vector.extract_strided_slice %189 {offsets = [1, 0], sizes = [1, 32], strides = [1, 1]} : vector<8x32xf32> to vector<1x32xf32>
    %193 = vector.shape_cast %192 : vector<1x32xf32> to vector<32xf32>
    %194 = vector.extract_strided_slice %189 {offsets = [2, 0], sizes = [1, 32], strides = [1, 1]} : vector<8x32xf32> to vector<1x32xf32>
    %195 = vector.shape_cast %194 : vector<1x32xf32> to vector<32xf32>
    %196 = vector.extract_strided_slice %189 {offsets = [3, 0], sizes = [1, 32], strides = [1, 1]} : vector<8x32xf32> to vector<1x32xf32>
    %197 = vector.shape_cast %196 : vector<1x32xf32> to vector<32xf32>
    %198 = vector.extract_strided_slice %189 {offsets = [4, 0], sizes = [1, 32], strides = [1, 1]} : vector<8x32xf32> to vector<1x32xf32>
    %199 = vector.shape_cast %198 : vector<1x32xf32> to vector<32xf32>
    %200 = vector.extract_strided_slice %189 {offsets = [5, 0], sizes = [1, 32], strides = [1, 1]} : vector<8x32xf32> to vector<1x32xf32>
    %201 = vector.shape_cast %200 : vector<1x32xf32> to vector<32xf32>
    %202 = vector.extract_strided_slice %189 {offsets = [6, 0], sizes = [1, 32], strides = [1, 1]} : vector<8x32xf32> to vector<1x32xf32>
    %203 = vector.shape_cast %202 : vector<1x32xf32> to vector<32xf32>
    %204 = vector.extract_strided_slice %189 {offsets = [7, 0], sizes = [1, 32], strides = [1, 1]} : vector<8x32xf32> to vector<1x32xf32>
    %205 = vector.shape_cast %204 : vector<1x32xf32> to vector<32xf32>
    %206 = vector.shape_cast %193 : vector<32xf32> to vector<1x32xf32>
    %207 = vector.broadcast %206 : vector<1x32xf32> to vector<2x32xf32>
    %208 = arith.mulf %1, %207 : vector<2x32xf32>
    %209 = arith.negf %208 : vector<2x32xf32>
    %210 = math.exp %209 : vector<2x32xf32>
    %cst_30 = arith.constant 1.000000e+00 : f32
    %211 = vector.broadcast %cst_30 : f32 to vector<2x32xf32>
    %212 = arith.addf %211, %210 : vector<2x32xf32>
    %213 = arith.divf %211, %212 : vector<2x32xf32>
    %214 = arith.mulf %213, %1 : vector<2x32xf32>
    %215 = vector.shape_cast %191 : vector<32xf32> to vector<1x32xf32>
    %216 = vector.broadcast %215 : vector<1x32xf32> to vector<16x32xf32>
    %217 = arith.mulf %187, %216 : vector<16x32xf32>
    %218 = arith.negf %217 : vector<16x32xf32>
    %219 = math.exp %218 : vector<16x32xf32>
    %cst_31 = arith.constant 1.000000e+00 : f32
    %220 = vector.broadcast %cst_31 : f32 to vector<16x32xf32>
    %221 = arith.addf %220, %219 : vector<16x32xf32>
    %222 = arith.divf %220, %221 : vector<16x32xf32>
    %223 = math.exp %187 : vector<16x32xf32>
    %224 = arith.mulf %223, %187 : vector<16x32xf32>
    %cst_32 = arith.constant dense<0.000000e+00> : vector<16xf32>
    %225 = vector.multi_reduction <add>, %222, %cst_32 [1] : vector<16x32xf32> to vector<16xf32>
    %226 = vector.shape_cast %225 : vector<16xf32> to vector<16x1xf32>
    %cst_33 = arith.constant 3.200000e+01 : f32
    %227 = vector.broadcast %cst_33 : f32 to vector<16x1xf32>
    %228 = arith.divf %226, %227 : vector<16x1xf32>
    %cst_34 = arith.constant dense<0.000000e+00> : vector<16xf32>
    %229 = vector.multi_reduction <add>, %223, %cst_34 [1] : vector<16x32xf32> to vector<16xf32>
    %230 = vector.shape_cast %229 : vector<16xf32> to vector<16x1xf32>
    %cst_35 = arith.constant 0.000000e+00 : f32
    %231 = vector.broadcast %cst_35 : f32 to vector<2x1xf32>
    %cst_36 = arith.constant 0.000000e+00 : f32
    %232 = vector.broadcast %cst_36 : f32 to vector<2x32xf32>
    %233 = vector.extract_strided_slice %228 {offsets = [0, 0], sizes = [2, 1], strides = [1, 1]} : vector<16x1xf32> to vector<2x1xf32>
    %234 = arith.mulf %233, %231 : vector<2x1xf32>
    %235 = vector.extract_strided_slice %230 {offsets = [0, 0], sizes = [2, 1], strides = [1, 1]} : vector<16x1xf32> to vector<2x1xf32>
    %236 = arith.addf %234, %235 : vector<2x1xf32>
    %237 = vector.extract_strided_slice %222 {offsets = [0, 0], sizes = [2, 32], strides = [1, 1]} : vector<16x32xf32> to vector<2x32xf32>
    %238 = arith.mulf %237, %232 : vector<2x32xf32>
    %239 = vector.extract_strided_slice %224 {offsets = [0, 0], sizes = [2, 32], strides = [1, 1]} : vector<16x32xf32> to vector<2x32xf32>
    %240 = arith.addf %238, %239 : vector<2x32xf32>
    %241 = arith.addf %240, %214 : vector<2x32xf32>
    %242 = vector.extract_strided_slice %228 {offsets = [2, 0], sizes = [2, 1], strides = [1, 1]} : vector<16x1xf32> to vector<2x1xf32>
    %243 = arith.mulf %242, %236 : vector<2x1xf32>
    %244 = vector.extract_strided_slice %230 {offsets = [2, 0], sizes = [2, 1], strides = [1, 1]} : vector<16x1xf32> to vector<2x1xf32>
    %245 = arith.addf %243, %244 : vector<2x1xf32>
    %246 = vector.extract_strided_slice %222 {offsets = [2, 0], sizes = [2, 32], strides = [1, 1]} : vector<16x32xf32> to vector<2x32xf32>
    %247 = arith.mulf %246, %241 : vector<2x32xf32>
    %248 = vector.extract_strided_slice %224 {offsets = [2, 0], sizes = [2, 32], strides = [1, 1]} : vector<16x32xf32> to vector<2x32xf32>
    %249 = arith.addf %247, %248 : vector<2x32xf32>
    %250 = arith.addf %249, %214 : vector<2x32xf32>
    %251 = vector.extract_strided_slice %228 {offsets = [4, 0], sizes = [2, 1], strides = [1, 1]} : vector<16x1xf32> to vector<2x1xf32>
    %252 = arith.mulf %251, %245 : vector<2x1xf32>
    %253 = vector.extract_strided_slice %230 {offsets = [4, 0], sizes = [2, 1], strides = [1, 1]} : vector<16x1xf32> to vector<2x1xf32>
    %254 = arith.addf %252, %253 : vector<2x1xf32>
    %255 = vector.extract_strided_slice %222 {offsets = [4, 0], sizes = [2, 32], strides = [1, 1]} : vector<16x32xf32> to vector<2x32xf32>
    %256 = arith.mulf %255, %250 : vector<2x32xf32>
    %257 = vector.extract_strided_slice %224 {offsets = [4, 0], sizes = [2, 32], strides = [1, 1]} : vector<16x32xf32> to vector<2x32xf32>
    %258 = arith.addf %256, %257 : vector<2x32xf32>
    %259 = arith.addf %258, %214 : vector<2x32xf32>
    %260 = vector.extract_strided_slice %228 {offsets = [6, 0], sizes = [2, 1], strides = [1, 1]} : vector<16x1xf32> to vector<2x1xf32>
    %261 = arith.mulf %260, %254 : vector<2x1xf32>
    %262 = vector.extract_strided_slice %230 {offsets = [6, 0], sizes = [2, 1], strides = [1, 1]} : vector<16x1xf32> to vector<2x1xf32>
    %263 = arith.addf %261, %262 : vector<2x1xf32>
    %264 = vector.extract_strided_slice %222 {offsets = [6, 0], sizes = [2, 32], strides = [1, 1]} : vector<16x32xf32> to vector<2x32xf32>
    %265 = arith.mulf %264, %259 : vector<2x32xf32>
    %266 = vector.extract_strided_slice %224 {offsets = [6, 0], sizes = [2, 32], strides = [1, 1]} : vector<16x32xf32> to vector<2x32xf32>
    %267 = arith.addf %265, %266 : vector<2x32xf32>
    %268 = arith.addf %267, %214 : vector<2x32xf32>
    %269 = vector.extract_strided_slice %228 {offsets = [8, 0], sizes = [2, 1], strides = [1, 1]} : vector<16x1xf32> to vector<2x1xf32>
    %270 = arith.mulf %269, %263 : vector<2x1xf32>
    %271 = vector.extract_strided_slice %230 {offsets = [8, 0], sizes = [2, 1], strides = [1, 1]} : vector<16x1xf32> to vector<2x1xf32>
    %272 = arith.addf %270, %271 : vector<2x1xf32>
    %273 = vector.extract_strided_slice %222 {offsets = [8, 0], sizes = [2, 32], strides = [1, 1]} : vector<16x32xf32> to vector<2x32xf32>
    %274 = arith.mulf %273, %268 : vector<2x32xf32>
    %275 = vector.extract_strided_slice %224 {offsets = [8, 0], sizes = [2, 32], strides = [1, 1]} : vector<16x32xf32> to vector<2x32xf32>
    %276 = arith.addf %274, %275 : vector<2x32xf32>
    %277 = arith.addf %276, %214 : vector<2x32xf32>
    %278 = vector.extract_strided_slice %228 {offsets = [10, 0], sizes = [2, 1], strides = [1, 1]} : vector<16x1xf32> to vector<2x1xf32>
    %279 = arith.mulf %278, %272 : vector<2x1xf32>
    %280 = vector.extract_strided_slice %230 {offsets = [10, 0], sizes = [2, 1], strides = [1, 1]} : vector<16x1xf32> to vector<2x1xf32>
    %281 = arith.addf %279, %280 : vector<2x1xf32>
    %282 = vector.extract_strided_slice %222 {offsets = [10, 0], sizes = [2, 32], strides = [1, 1]} : vector<16x32xf32> to vector<2x32xf32>
    %283 = arith.mulf %282, %277 : vector<2x32xf32>
    %284 = vector.extract_strided_slice %224 {offsets = [10, 0], sizes = [2, 32], strides = [1, 1]} : vector<16x32xf32> to vector<2x32xf32>
    %285 = arith.addf %283, %284 : vector<2x32xf32>
    %286 = arith.addf %285, %214 : vector<2x32xf32>
    %287 = vector.extract_strided_slice %228 {offsets = [12, 0], sizes = [2, 1], strides = [1, 1]} : vector<16x1xf32> to vector<2x1xf32>
    %288 = arith.mulf %287, %281 : vector<2x1xf32>
    %289 = vector.extract_strided_slice %230 {offsets = [12, 0], sizes = [2, 1], strides = [1, 1]} : vector<16x1xf32> to vector<2x1xf32>
    %290 = arith.addf %288, %289 : vector<2x1xf32>
    %291 = vector.extract_strided_slice %222 {offsets = [12, 0], sizes = [2, 32], strides = [1, 1]} : vector<16x32xf32> to vector<2x32xf32>
    %292 = arith.mulf %291, %286 : vector<2x32xf32>
    %293 = vector.extract_strided_slice %224 {offsets = [12, 0], sizes = [2, 32], strides = [1, 1]} : vector<16x32xf32> to vector<2x32xf32>
    %294 = arith.addf %292, %293 : vector<2x32xf32>
    %295 = arith.addf %294, %214 : vector<2x32xf32>
    %296 = vector.extract_strided_slice %228 {offsets = [14, 0], sizes = [2, 1], strides = [1, 1]} : vector<16x1xf32> to vector<2x1xf32>
    %297 = arith.mulf %296, %290 : vector<2x1xf32>
    %298 = vector.extract_strided_slice %230 {offsets = [14, 0], sizes = [2, 1], strides = [1, 1]} : vector<16x1xf32> to vector<2x1xf32>
    %299 = arith.addf %297, %298 : vector<2x1xf32>
    %300 = vector.extract_strided_slice %222 {offsets = [14, 0], sizes = [2, 32], strides = [1, 1]} : vector<16x32xf32> to vector<2x32xf32>
    %301 = arith.mulf %300, %295 : vector<2x32xf32>
    %302 = vector.extract_strided_slice %224 {offsets = [14, 0], sizes = [2, 32], strides = [1, 1]} : vector<16x32xf32> to vector<2x32xf32>
    %303 = arith.addf %301, %302 : vector<2x32xf32>
    %304 = arith.addf %303, %214 : vector<2x32xf32>
    %305 = tpu.concatenate %236, %245, %254, %263, %272, %281, %290, %299 in 0 : vector<2x1xf32>, vector<2x1xf32>, vector<2x1xf32>, vector<2x1xf32>, vector<2x1xf32>, vector<2x1xf32>, vector<2x1xf32>, vector<2x1xf32> -> vector<16x1xf32>
    %306 = tpu.concatenate %241, %250, %259, %268, %277, %286, %295, %304 in 0 : vector<2x32xf32>, vector<2x32xf32>, vector<2x32xf32>, vector<2x32xf32>, vector<2x32xf32>, vector<2x32xf32>, vector<2x32xf32>, vector<2x32xf32> -> vector<16x32xf32>
    %cst_37 = arith.constant 9.99999993E-9 : f32
    %307 = vector.broadcast %cst_37 : f32 to vector<16x1xf32>
    %308 = arith.addf %305, %307 : vector<16x1xf32>
    %309 = tpu.reciprocal %308 : vector<16x1xf32> -> vector<16x1xf32>
    %310 = vector.broadcast %309 : vector<16x1xf32> to vector<16x32xf32>
    %311 = arith.mulf %306, %310 : vector<16x32xf32>
    %cst_38 = arith.constant dense<0.000000e+00> : vector<16xf32>
    %312 = vector.multi_reduction <add>, %311, %cst_38 [1] : vector<16x32xf32> to vector<16xf32>
    %313 = vector.shape_cast %312 : vector<16xf32> to vector<16x1xf32>
    %cst_39 = arith.constant 3.200000e+01 : f32
    %314 = vector.broadcast %cst_39 : f32 to vector<16x1xf32>
    %315 = arith.divf %313, %314 : vector<16x1xf32>
    %316 = vector.broadcast %315 : vector<16x1xf32> to vector<16x32xf32>
    %317 = arith.subf %311, %316 : vector<16x32xf32>
    %318 = arith.mulf %317, %317 : vector<16x32xf32>
    %cst_40 = arith.constant dense<0.000000e+00> : vector<16xf32>
    %319 = vector.multi_reduction <add>, %318, %cst_40 [1] : vector<16x32xf32> to vector<16xf32>
    %320 = vector.shape_cast %319 : vector<16xf32> to vector<16x1xf32>
    %cst_41 = arith.constant 3.200000e+01 : f32
    %321 = vector.broadcast %cst_41 : f32 to vector<16x1xf32>
    %322 = arith.divf %320, %321 : vector<16x1xf32>
    %cst_42 = arith.constant 9.99999974E-6 : f32
    %323 = vector.broadcast %cst_42 : f32 to vector<16x1xf32>
    %324 = arith.addf %322, %323 : vector<16x1xf32>
    %325 = math.rsqrt %324 : vector<16x1xf32>
    %326 = vector.broadcast %325 : vector<16x1xf32> to vector<16x32xf32>
    %327 = arith.mulf %317, %326 : vector<16x32xf32>
    %328 = vector.shape_cast %195 : vector<32xf32> to vector<1x32xf32>
    %329 = vector.broadcast %328 : vector<1x32xf32> to vector<16x32xf32>
    %330 = arith.mulf %327, %329 : vector<16x32xf32>
    %331 = vector.shape_cast %197 : vector<32xf32> to vector<1x32xf32>
    %332 = vector.broadcast %331 : vector<1x32xf32> to vector<16x32xf32>
    %333 = arith.addf %330, %332 : vector<16x32xf32>
    %c1_43 = arith.constant 1 : index
    %c0_44 = arith.constant 0 : index
    %c0_45 = arith.constant 0 : index
    %334 = vector.load %arg3[%c1_43, %c0_44, %c0_45] : memref<2x32x256xf32, #tpu.memory_space<vmem>>, vector<1x32x256xf32>
    %335 = vector.shape_cast %334 : vector<1x32x256xf32> to vector<32x256xf32>
    %cst_46 = arith.constant dense<0.000000e+00> : vector<16x256xf32>
    %336 = tpu.matmul %333, %335, %cst_46 {dimension_numbers = #tpu.dot_dimension_numbers<[1], [0], [0], [1], [0, 0, 1, 1], [], []>} : vector<16x32xf32>, vector<32x256xf32>, vector<16x256xf32> -> vector<16x256xf32>
    %337 = vector.extract_strided_slice %336 {offsets = [0, 0], sizes = [16, 32], strides = [1, 1]} : vector<16x256xf32> to vector<16x32xf32>
    %338 = vector.shape_cast %203 : vector<32xf32> to vector<1x32xf32>
    %339 = vector.broadcast %338 : vector<1x32xf32> to vector<16x32xf32>
    %340 = arith.addf %337, %339 : vector<16x32xf32>
    %341 = arith.negf %340 : vector<16x32xf32>
    %342 = math.exp %341 : vector<16x32xf32>
    %cst_47 = arith.constant 1.000000e+00 : f32
    %343 = vector.broadcast %cst_47 : f32 to vector<16x32xf32>
    %344 = arith.addf %343, %342 : vector<16x32xf32>
    %345 = arith.divf %343, %344 : vector<16x32xf32>
    %346 = vector.extract_strided_slice %336 {offsets = [0, 128], sizes = [16, 32], strides = [1, 1]} : vector<16x256xf32> to vector<16x32xf32>
    %347 = vector.shape_cast %205 : vector<32xf32> to vector<1x32xf32>
    %348 = vector.broadcast %347 : vector<1x32xf32> to vector<16x32xf32>
    %349 = arith.addf %346, %348 : vector<16x32xf32>
    %350 = arith.mulf %345, %349 : vector<16x32xf32>
    %cst_48 = arith.constant dense<0.000000e+00> : vector<16xf32>
    %351 = vector.multi_reduction <add>, %350, %cst_48 [1] : vector<16x32xf32> to vector<16xf32>
    %352 = vector.shape_cast %351 : vector<16xf32> to vector<16x1xf32>
    %cst_49 = arith.constant 3.200000e+01 : f32
    %353 = vector.broadcast %cst_49 : f32 to vector<16x1xf32>
    %354 = arith.divf %352, %353 : vector<16x1xf32>
    %355 = vector.broadcast %354 : vector<16x1xf32> to vector<16x32xf32>
    %356 = arith.subf %350, %355 : vector<16x32xf32>
    %357 = arith.mulf %356, %356 : vector<16x32xf32>
    %cst_50 = arith.constant dense<0.000000e+00> : vector<16xf32>
    %358 = vector.multi_reduction <add>, %357, %cst_50 [1] : vector<16x32xf32> to vector<16xf32>
    %359 = vector.shape_cast %358 : vector<16xf32> to vector<16x1xf32>
    %cst_51 = arith.constant 3.200000e+01 : f32
    %360 = vector.broadcast %cst_51 : f32 to vector<16x1xf32>
    %361 = arith.divf %359, %360 : vector<16x1xf32>
    %cst_52 = arith.constant 9.99999974E-6 : f32
    %362 = vector.broadcast %cst_52 : f32 to vector<16x1xf32>
    %363 = arith.addf %361, %362 : vector<16x1xf32>
    %364 = math.rsqrt %363 : vector<16x1xf32>
    %365 = vector.broadcast %364 : vector<16x1xf32> to vector<16x32xf32>
    %366 = arith.mulf %356, %365 : vector<16x32xf32>
    %367 = vector.shape_cast %199 : vector<32xf32> to vector<1x32xf32>
    %368 = vector.broadcast %367 : vector<1x32xf32> to vector<16x32xf32>
    %369 = arith.mulf %366, %368 : vector<16x32xf32>
    %370 = vector.shape_cast %201 : vector<32xf32> to vector<1x32xf32>
    %371 = vector.broadcast %370 : vector<1x32xf32> to vector<16x32xf32>
    %372 = arith.addf %369, %371 : vector<16x32xf32>
    %373 = arith.addf %187, %372 : vector<16x32xf32>
    %c0_53 = arith.constant 0 : index
    %c0_54 = arith.constant 0 : index
    %374 = vector.load %arg4[%c0_53, %c0_54] : memref<40x128xf32, #tpu.memory_space<vmem>>, vector<40x128xf32>
    %375 = vector.extract_strided_slice %373 {offsets = [14, 0], sizes = [2, 32], strides = [1, 1]} : vector<16x32xf32> to vector<2x32xf32>
    %376 = vector.extract_strided_slice %374 {offsets = [0, 0], sizes = [32, 128], strides = [1, 1]} : vector<40x128xf32> to vector<32x128xf32>
    %cst_55 = arith.constant dense<0.000000e+00> : vector<2x128xf32>
    %377 = tpu.matmul %375, %376, %cst_55 {dimension_numbers = #tpu.dot_dimension_numbers<[1], [0], [0], [1], [0, 0, 1, 1], [], []>} : vector<2x32xf32>, vector<32x128xf32>, vector<2x128xf32> -> vector<2x128xf32>
    %378 = vector.extract_strided_slice %374 {offsets = [32, 0], sizes = [1, 128], strides = [1, 1]} : vector<40x128xf32> to vector<1x128xf32>
    %379 = vector.shape_cast %378 : vector<1x128xf32> to vector<128xf32>
    %380 = vector.shape_cast %379 : vector<128xf32> to vector<1x128xf32>
    %381 = vector.broadcast %380 : vector<1x128xf32> to vector<2x128xf32>
    %382 = arith.addf %377, %381 : vector<2x128xf32>
    %c0_56 = arith.constant 0 : index
    %c0_57 = arith.constant 0 : index
    %383 = vector.load %arg5[%c0_56, %c0_57] : memref<2x128xf32, #tpu.memory_space<vmem>>, vector<2x128xf32>
    tpu.vector_store %arg5[%c0_56, %c0_57], %382 {strides = array<i32>} : memref<2x128xf32, #tpu.memory_space<vmem>>, vector<2x128xf32>,
    return
  }
}

</mosaic_0001>

<llo_original>
// kernel: attention_stream_decoder.1
$region0: #{attention_stream_decoder.1}
  #allocation0 [shape = 'u32[]', space=smem, size = 0x4, offset = 0x4, fixed_abs, tag = 'smem constant byte address 0x4 - core index']
  #allocation1 [shape = 'u32[144,128]{1,0:T(1,128)}', space=vmem, size = 0x12000, scoped, tag = 'internal scratch']
  %s0 = inlined_call_operand.vmem [shape: f32[16,32], index: 0, kind: input, shape index: {}]
  %s1 = inlined_call_operand.vmem [shape: f32[2,32], index: 1, kind: input, shape index: {}]
  %s2 = inlined_call_operand.vmem [shape: f32[2,8,32], index: 2, kind: input, shape index: {}]
  %s3 = inlined_call_operand.vmem [shape: f32[2,32,256], index: 3, kind: input, shape index: {}]
  %s4 = inlined_call_operand.vmem [shape: f32[40,128], index: 4, kind: input, shape index: {}]
  %s5 = inlined_call_operand.hbm [shape: f32[2,128], index: 5, kind: output, shape index: {}]
  %s6 = sld [smem:[#allocation0]]
  $region30: #{attention_stream_decoder.1} parent=0
    _
  %s8 = ssub.s32 1, %s6
  %s9 = scalar_select 0, %s8, %s6
  $region1: #{attention_stream_decoder.1} parent=0
    #allocation2 [shape = 'u8[1024]{0}', space=vmem, size = 0x400, scoped, tag = 'output window, operand 0, single buffered']
    #allocation3 [shape = 's32[1]{0}', space=sflag, size = 0x4, scoped, tag = 'scoped memory for attention_stream_decoder.1']
    %10 = vsyncpa [#allocation3], 0
    // Predicated region
    $region2: #{attention_stream_decoder.1} parent=1 // pred_check
      _
    $region3: #{attention_stream_decoder.1} parent=1 // pred_check_branch
      %12 = sbr.rel (0) target = $region5
    $region4: #{attention_stream_decoder.1} parent=1 // pred_region
      _
    $region5: #{attention_stream_decoder.1} parent=1 // pred_fallthru
      _
    // Predicated region
    $region6: #{attention_stream_decoder.1} parent=1 // pred_check
      _
    $region7: #{attention_stream_decoder.1} parent=1 // pred_check_branch
      %14 = sbr.rel (0) target = $region9
    $region8: #{attention_stream_decoder.1} parent=1 // pred_region
      _
    $region9: #{attention_stream_decoder.1} parent=1 // pred_fallthru
      _
    // Predicated region
    $region10: #{attention_stream_decoder.1} parent=1 // pred_check
      _
    $region11: #{attention_stream_decoder.1} parent=1 // pred_check_branch
      %16 = sbr.rel (0) target = $region13
    $region12: #{attention_stream_decoder.1} parent=1 // pred_region
      _
    $region13: #{attention_stream_decoder.1} parent=1 // pred_fallthru
      _
    // Predicated region
    $region14: #{attention_stream_decoder.1} parent=1 // pred_check
      _
    $region15: #{attention_stream_decoder.1} parent=1 // pred_check_branch
      %18 = sbr.rel (0) target = $region17
    $region16: #{attention_stream_decoder.1} parent=1 // pred_region
      _
    $region17: #{attention_stream_decoder.1} parent=1 // pred_fallthru
      _
    // Predicated region
    $region18: #{attention_stream_decoder.1} parent=1 // pred_check
      _
    $region19: #{attention_stream_decoder.1} parent=1 // pred_check_branch
      %20 = sbr.rel (0) target = $region21
    $region20: #{attention_stream_decoder.1} parent=1 // pred_region
      _
    $region21: #{attention_stream_decoder.1} parent=1 // pred_fallthru
      _
    %v21 = vld [vmem:[%s0] sm:$0xff]
    %v22 = vld [vmem:[%s0 + $0x8] sm:$0xff]
    %v23 = vld [vmem:[%s1] sm:$0x3]
    %v24 = vld [vmem:[%s2] sm:$0xff]
    %v25 = vlaneseq
    %v26 = vshrl.u32 %v25, 7
    %v27 = vsub.s32 1, %v26
    %v28 = vrot.slane %v24, %v27
    %v29 = vmul.f32 %v23, %v28
    %v30 = vxor.u32 %v29, 2147483648
    %v31 = vmul.f32 %v30, 1.442695
    %v32 = vpow.pop %v31
    %v33 = vadd.f32 %v32, 1.0
    %v34 = vrcp.pop %v33
    %v35 = vmul.f32 1.0, %v34
    %v36 = vmul.f32 %v35, %v23
    %v37 = vlaneseq
    %v38 = vshrl.u32 %v37, 7
    %v39 = vsub.s32 0, %v38
    %v40 = vrot.slane %v24, %v39
    %v41 = vmul.f32 %v21, %v40
    %v42 = vmul.f32 %v22, %v40
    %v43 = vxor.u32 %v41, 2147483648
    %v44 = vxor.u32 %v42, 2147483648
    %v45 = vmul.f32 %v43, 1.442695
    %v46 = vpow.pop %v45
    %v47 = vmul.f32 %v44, 1.442695
    %v48 = vpow.pop %v47
    %v49 = vadd.f32 %v46, 1.0
    %v50 = vadd.f32 %v48, 1.0
    %v51 = vrcp.pop %v49
    %v52 = vmul.f32 1.0, %v51
    %v53 = vrcp.pop %v50
    %v54 = vmul.f32 1.0, %v53
    %v55 = vmul.f32 %v21, 1.442695
    %v56 = vpow.pop %v55
    %v57 = vmul.f32 %v22, 1.442695
    %v58 = vpow.pop %v57
    %v59 = vmul.f32 %v56, %v21
    %v60 = vmul.f32 %v58, %v22
    %vm61 = vcmask 261120
    %v62 = vsel %vm61, %v52, 0.0
    %63 = vadd.xlane.f32.xlu0 %v62
    %v64 = vpop.xlane.xlu0 %63
    %v65 = vsel %vm61, %v54, 0.0
    %66 = vadd.xlane.f32.xlu0 %v65
    %v67 = vpop.xlane.xlu0 %66
    %v68 = vrcp.pop 32.0
    %v69 = vmul.f32 %v64, %v68
    %v70 = vmul.f32 %v67, %v68
    %v71 = vsel %vm61, %v56, 0.0
    %72 = vadd.xlane.f32.xlu0 %v71
    %v73 = vpop.xlane.xlu0 %72
    %v74 = vsel %vm61, %v58, 0.0
    %75 = vadd.xlane.f32.xlu0 %v74
    %v76 = vpop.xlane.xlu0 %75
    %v77 = vmul.f32 %v69, 0.0
    %v78 = vadd.f32 %v77, %v73
    %v79 = vmul.f32 %v52, 0.0
    %v80 = vadd.f32 %v79, %v59
    %v81 = vadd.f32 %v80, %v36
    %v83 = vrot.slane %v78, 6
    %v85 = vmul.f32 %v69, %v83
    %v86 = vadd.f32 %v85, %v73
    %v88 = vrot.slane %v81, 6
    %v90 = vmul.f32 %v52, %v88
    %v91 = vadd.f32 %v90, %v59
    %v93 = vrot.slane %v36, 6
    %v95 = vadd.f32 %v91, %v93
    %v97 = vrot.slane %v86, 6
    %v99 = vmul.f32 %v69, %v97
    %v100 = vadd.f32 %v99, %v73
    %v102 = vrot.slane %v95, 6
    %v104 = vmul.f32 %v52, %v102
    %v105 = vadd.f32 %v104, %v59
    %v106 = vrot.slane %v36, 4
    %v108 = vadd.f32 %v105, %v106
    %v110 = vrot.slane %v100, 6
    %v112 = vmul.f32 %v69, %v110
    %v113 = vadd.f32 %v112, %v73
    %v115 = vrot.slane %v108, 6
    %v117 = vmul.f32 %v52, %v115
    %v118 = vadd.f32 %v117, %v59
    %v119 = vrot.slane %v36, 2
    %v121 = vadd.f32 %v118, %v119
    %v123 = vrot.slane %v113, 6
    %v125 = vmul.f32 %v70, %v123
    %v126 = vadd.f32 %v125, %v76
    %v128 = vrot.slane %v121, 6
    %v130 = vmul.f32 %v54, %v128
    %v131 = vadd.f32 %v130, %v60
    %v132 = vadd.f32 %v131, %v36
    %v134 = vrot.slane %v126, 6
    %v136 = vmul.f32 %v70, %v134
    %v137 = vadd.f32 %v136, %v76
    %v139 = vrot.slane %v132, 6
    %v141 = vmul.f32 %v54, %v139
    %v142 = vadd.f32 %v141, %v60
    %v143 = vadd.f32 %v142, %v93
    %v145 = vrot.slane %v137, 6
    %v147 = vmul.f32 %v70, %v145
    %v148 = vadd.f32 %v147, %v76
    %v150 = vrot.slane %v143, 6
    %v152 = vmul.f32 %v54, %v150
    %v153 = vadd.f32 %v152, %v60
    %v154 = vadd.f32 %v153, %v106
    %v156 = vrot.slane %v148, 6
    %v158 = vmul.f32 %v70, %v156
    %v159 = vadd.f32 %v158, %v76
    %v161 = vrot.slane %v154, 6
    %v163 = vmul.f32 %v54, %v161
    %v164 = vadd.f32 %v163, %v60
    %v165 = vadd.f32 %v164, %v119
    %vm166 = vcmask 1041408
    %v167 = vsel %vm166, %v78, %v86
    %vm168 = vcmask 1043456
    %v169 = vsel %vm168, %v167, %v100
    %vm170 = vcmask 1045504
    %v171 = vsel %vm170, %v169, %v113
    %v172 = vsel %vm166, %v126, %v137
    %v173 = vsel %vm168, %v172, %v148
    %v174 = vsel %vm170, %v173, %v159
    %v175 = vsel %vm166, %v81, %v95
    %v176 = vsel %vm168, %v175, %v108
    %v177 = vsel %vm170, %v176, %v121
    %v178 = vsel %vm166, %v132, %v143
    %v179 = vsel %vm168, %v178, %v154
    %v180 = vsel %vm170, %v179, %v165
    %v181 = vadd.f32 %v171, 1e-08
    %v182 = vadd.f32 %v174, 1e-08
    %v183 = vrcp.pop %v181
    %v184 = vrcp.pop %v182
    %186 = vset.pattern.permute.xlu0 0
    %187 = vperm.xlu0 %186, %v183
    %v188 = vpop.permute.xlu0 %187
    %191 = vset.pattern.permute.xlu0 0
    %192 = vperm.xlu0 %191, %v184
    %v193 = vpop.permute.xlu0 %192
    %v195 = vmul.f32 %v177, %v188
    %v196 = vmul.f32 %v180, %v193
    %v197 = vsel %vm61, %v195, 0.0
    %198 = vadd.xlane.f32.xlu0 %v197
    %v199 = vpop.xlane.xlu0 %198
    %v200 = vsel %vm61, %v196, 0.0
    %201 = vadd.xlane.f32.xlu0 %v200
    %v202 = vpop.xlane.xlu0 %201
    %v203 = vmul.f32 %v199, %v68
    %v204 = vmul.f32 %v202, %v68
    %v205 = vsub.f32 %v195, %v203
    %v206 = vsub.f32 %v196, %v204
    %v207 = vmul.f32 %v205, %v205
    %v208 = vmul.f32 %v206, %v206
    %v209 = vsel %vm61, %v207, 0.0
    %210 = vadd.xlane.f32.xlu0 %v209
    %v211 = vpop.xlane.xlu0 %210
    %v212 = vsel %vm61, %v208, 0.0
    %213 = vadd.xlane.f32.xlu0 %v212
    %v214 = vpop.xlane.xlu0 %213
    %v215 = vmul.f32 %v211, %v68
    %v216 = vmul.f32 %v214, %v68
    %v217 = vadd.f32 %v215, 1e-05
    %v218 = vadd.f32 %v216, 1e-05
    %v219 = vrsqrt.pop %v217
    %v220 = vrsqrt.pop %v218
    %v221 = vmul.f32 %v205, %v219
    %v222 = vmul.f32 %v206, %v220
    %v223 = vlaneseq
    %v224 = vshrl.u32 %v223, 7
    %v225 = vsub.s32 2, %v224
    %v226 = vrot.slane %v24, %v225
    %v227 = vmul.f32 %v221, %v226
    %v228 = vmul.f32 %v222, %v226
    %v229 = vlaneseq
    %v230 = vshrl.u32 %v229, 7
    %v231 = vsub.s32 3, %v230
    %v232 = vrot.slane %v24, %v231
    %v233 = vadd.f32 %v227, %v232
    %v234 = vadd.f32 %v228, %v232
    %v235 = vld [vmem:[%s3] sm:$0xff]
    %v236 = vld [vmem:[%s3 + $0x8] sm:$0xff]
    %v237 = vld [vmem:[%s3 + $0x10] sm:$0xff]
    %v238 = vld [vmem:[%s3 + $0x18] sm:$0xff]
    %v239 = vld [vmem:[%s3 + $0x20] sm:$0xff]
    %v240 = vld [vmem:[%s3 + $0x28] sm:$0xff]
    %v241 = vld [vmem:[%s3 + $0x30] sm:$0xff]
    %v242 = vld [vmem:[%s3 + $0x38] sm:$0xff]
    %v244 = vsel %vm61, %v233, 0
    %v247 = vsel %vm61, %v234, 0
    %249 = vmatprep.subr.mxu0 0.0
    %250 = vmatpush1.msra.mxu0 0.0
    %251 = vmatprep.subr.mxu0 0.0
    %252 = vmatpush1.msra.mxu0 0.0
    %253 = vmatprep.subr.mxu0 0.0
    %254 = vmatpush1.msra.mxu0 0.0
    %255 = vmatprep.subr.mxu0 0.0
    %256 = vmatpush1.msra.mxu0 0.0
    %257 = vmatprep.subr.mxu0 0.0
    %258 = vmatpush1.msra.mxu0 0.0
    %259 = vmatprep.subr.mxu0 0.0
    %260 = vmatpush1.msra.mxu0 0.0
    %261 = vmatprep.subr.mxu0 0.0
    %262 = vmatpush1.msra.mxu0 0.0
    %263 = vmatprep.subr.mxu0 0.0
    %264 = vmatpush1.msra.mxu0 0.0
    %265 = vmatprep.subr.mxu0 0.0
    %266 = vmatpush1.msra.mxu0 0.0
    %267 = vmatprep.subr.mxu0 0.0
    %268 = vmatpush1.msra.mxu0 0.0
    %269 = vmatprep.subr.mxu0 0.0
    %270 = vmatpush1.msra.mxu0 0.0
    %271 = vmatprep.subr.mxu0 0.0
    %272 = vmatpush1.msra.mxu0 0.0
    %273 = vmatprep.subr.mxu0 %v242
    %274 = vmatpush1.msra.mxu0 %v241
    %275 = vmatprep.subr.mxu0 %v240
    %276 = vmatpush1.msra.mxu0 %v239
    %277 = vmatprep.subr.mxu0 %v238
    %278 = vmatpush1.msra.mxu0 %v237
    %279 = vmatprep.subr.mxu0 %v236
    %280 = vmatpush1.msra.mxu0 %v235
    %281 = vmatprep.subr.mxu0 0.0
    %282 = vmatpush2.msra.mxu0 0.0
    %283 = vmatprep.subr.mxu0 0.0
    %284 = vmatpush2.msra.mxu0 0.0
    %285 = vmatprep.subr.mxu0 0.0
    %286 = vmatpush2.msra.mxu0 0.0
    %287 = vmatprep.subr.mxu0 0.0
    %288 = vmatpush2.msra.mxu0 0.0
    %289 = vmatprep.subr.mxu0 0.0
    %290 = vmatpush2.msra.mxu0 0.0
    %291 = vmatprep.subr.mxu0 0.0
    %292 = vmatpush2.msra.mxu0 0.0
    %293 = vmatprep.subr.mxu0 0.0
    %294 = vmatpush2.msra.mxu0 0.0
    %295 = vmatprep.subr.mxu0 0.0
    %296 = vmatpush2.msra.mxu0 0.0
    %297 = vmatprep.subr.mxu0 0.0
    %298 = vmatpush2.msra.mxu0 0.0
    %299 = vmatprep.subr.mxu0 0.0
    %300 = vmatpush2.msra.mxu0 0.0
    %301 = vmatprep.subr.mxu0 0.0
    %302 = vmatpush2.msra.mxu0 0.0
    %303 = vmatprep.subr.mxu0 0.0
    %304 = vmatpush2.msra.mxu0 0.0
    %305 = vmatprep.subr.mxu0 0.0
    %306 = vmatpush2.msra.mxu0 0.0
    %307 = vmatprep.subr.mxu0 0.0
    %308 = vmatpush2.msra.mxu0 0.0
    %309 = vmatprep.subr.mxu0 0.0
    %310 = vmatpush2.msra.mxu0 0.0
    %311 = vmatprep.subr.mxu0 0.0
    %312 = vmatpush2.msra.mxu0 0.0
    %313 = vmatprep.mubr.f32.mxu0 0.0
    %314 = vmatmul.mubr.f32.gmra.mxu0 %v244
    %v315 = vpop.f32.mrf.mxu0
    %v316 = vadd.f32 0.0, %v315
    %v317 = vpop.f32.mrf.mxu0
    %v318 = vadd.f32 0.0, %v317
    %319 = vmatprep.mubr.f32.mxu0 0.0
    %320 = vmatmul.mubr.f32.gmra.mxu0 %v247
    %v321 = vpop.f32.mrf.mxu0
    %v322 = vadd.f32 0.0, %v321
    %v323 = vpop.f32.mrf.mxu0
    %v324 = vadd.f32 0.0, %v323
    %325 = vdwg.mxu0
    %v326 = vlaneseq
    %v327 = vshrl.u32 %v326, 7
    %v328 = vsub.s32 6, %v327
    %v329 = vrot.slane %v24, %v328
    %v330 = vadd.f32 %v316, %v329
    %v331 = vadd.f32 %v322, %v329
    %v332 = vxor.u32 %v330, 2147483648
    %v333 = vxor.u32 %v331, 2147483648
    %v334 = vmul.f32 %v332, 1.442695
    %v335 = vpow.pop %v334
    %v336 = vmul.f32 %v333, 1.442695
    %v337 = vpow.pop %v336
    %v338 = vadd.f32 %v335, 1.0
    %v339 = vadd.f32 %v337, 1.0
    %v340 = vrcp.pop %v338
    %v341 = vmul.f32 1.0, %v340
    %v342 = vrcp.pop %v339
    %v343 = vmul.f32 1.0, %v342
    %v344 = vlaneseq
    %v345 = vshrl.u32 %v344, 7
    %v346 = vsub.s32 7, %v345
    %v347 = vrot.slane %v24, %v346
    %v348 = vadd.f32 %v318, %v347
    %v349 = vadd.f32 %v324, %v347
    %v350 = vmul.f32 %v341, %v348
    %v351 = vmul.f32 %v343, %v349
    %v352 = vsel %vm61, %v350, 0.0
    %353 = vadd.xlane.f32.xlu0 %v352
    %v354 = vpop.xlane.xlu0 %353
    %v355 = vsel %vm61, %v351, 0.0
    %356 = vadd.xlane.f32.xlu0 %v355
    %v357 = vpop.xlane.xlu0 %356
    %v358 = vmul.f32 %v354, %v68
    %v359 = vmul.f32 %v357, %v68
    %v360 = vsub.f32 %v350, %v358
    %v361 = vsub.f32 %v351, %v359
    %v362 = vmul.f32 %v360, %v360
    %v363 = vmul.f32 %v361, %v361
    %v364 = vsel %vm61, %v362, 0.0
    %365 = vadd.xlane.f32.xlu0 %v364
    %v366 = vpop.xlane.xlu0 %365
    %v367 = vsel %vm61, %v363, 0.0
    %368 = vadd.xlane.f32.xlu0 %v367
    %v369 = vpop.xlane.xlu0 %368
    %v370 = vmul.f32 %v366, %v68
    %v371 = vmul.f32 %v369, %v68
    %v372 = vadd.f32 %v370, 1e-05
    %v373 = vadd.f32 %v371, 1e-05
    %v374 = vrsqrt.pop %v372
    %v375 = vrsqrt.pop %v373
    %v376 = vmul.f32 %v360, %v374
    %v377 = vmul.f32 %v361, %v375
    %v378 = vlaneseq
    %v379 = vshrl.u32 %v378, 7
    %v380 = vsub.s32 4, %v379
    %v381 = vrot.slane %v24, %v380
    %v382 = vmul.f32 %v376, %v381
    %v383 = vmul.f32 %v377, %v381
    %v384 = vlaneseq
    %v385 = vshrl.u32 %v384, 7
    %v386 = vsub.s32 5, %v385
    %v387 = vrot.slane %v24, %v386
    %v388 = vadd.f32 %v382, %v387
    %v389 = vadd.f32 %v383, %v387
    %v390 = vadd.f32 %v21, %v388
    %v391 = vadd.f32 %v22, %v389
    %s392 = scalar_lea.vmem %s2, 8
    %v393 = vld [vmem:[%s392] sm:$0xff]
    %v394 = vlaneseq
    %v395 = vshrl.u32 %v394, 7
    %v396 = vsub.s32 1, %v395
    %v397 = vrot.slane %v393, %v396
    %v398 = vmul.f32 %v23, %v397
    %v399 = vxor.u32 %v398, 2147483648
    %v400 = vmul.f32 %v399, 1.442695
    %v401 = vpow.pop %v400
    %v402 = vadd.f32 %v401, 1.0
    %v403 = vrcp.pop %v402
    %v404 = vmul.f32 1.0, %v403
    %v405 = vmul.f32 %v404, %v23
    %v406 = vlaneseq
    %v407 = vshrl.u32 %v406, 7
    %v408 = vsub.s32 0, %v407
    %v409 = vrot.slane %v393, %v408
    %v410 = vmul.f32 %v390, %v409
    %v411 = vmul.f32 %v391, %v409
    %v412 = vxor.u32 %v410, 2147483648
    %v413 = vxor.u32 %v411, 2147483648
    %v414 = vmul.f32 %v412, 1.442695
    %v415 = vpow.pop %v414
    %v416 = vmul.f32 %v413, 1.442695
    %v417 = vpow.pop %v416
    %v418 = vadd.f32 %v415, 1.0
    %v419 = vadd.f32 %v417, 1.0
    %v420 = vrcp.pop %v418
    %v421 = vmul.f32 1.0, %v420
    %v422 = vrcp.pop %v419
    %v423 = vmul.f32 1.0, %v422
    %v424 = vmul.f32 %v390, 1.442695
    %v425 = vpow.pop %v424
    %v426 = vmul.f32 %v391, 1.442695
    %v427 = vpow.pop %v426
    %v428 = vmul.f32 %v425, %v390
    %v429 = vmul.f32 %v427, %v391
    %v430 = vsel %vm61, %v421, 0.0
    %431 = vadd.xlane.f32.xlu0 %v430
    %v432 = vpop.xlane.xlu0 %431
    %v433 = vsel %vm61, %v423, 0.0
    %434 = vadd.xlane.f32.xlu0 %v433
    %v435 = vpop.xlane.xlu0 %434
    %v436 = vmul.f32 %v432, %v68
    %v437 = vmul.f32 %v435, %v68
    %v438 = vsel %vm61, %v425, 0.0
    %439 = vadd.xlane.f32.xlu0 %v438
    %v440 = vpop.xlane.xlu0 %439
    %v441 = vsel %vm61, %v427, 0.0
    %442 = vadd.xlane.f32.xlu0 %v441
    %v443 = vpop.xlane.xlu0 %442
    %v444 = vmul.f32 %v436, 0.0
    %v445 = vadd.f32 %v444, %v440
    %v446 = vmul.f32 %v421, 0.0
    %v447 = vadd.f32 %v446, %v428
    %v448 = vadd.f32 %v447, %v405
    %v450 = vrot.slane %v445, 6
    %v452 = vmul.f32 %v436, %v450
    %v453 = vadd.f32 %v452, %v440
    %v455 = vrot.slane %v448, 6
    %v457 = vmul.f32 %v421, %v455
    %v458 = vadd.f32 %v457, %v428
    %v460 = vrot.slane %v405, 6
    %v462 = vadd.f32 %v458, %v460
    %v464 = vrot.slane %v453, 6
    %v466 = vmul.f32 %v436, %v464
    %v467 = vadd.f32 %v466, %v440
    %v469 = vrot.slane %v462, 6
    %v471 = vmul.f32 %v421, %v469
    %v472 = vadd.f32 %v471, %v428
    %v473 = vrot.slane %v405, 4
    %v475 = vadd.f32 %v472, %v473
    %v477 = vrot.slane %v467, 6
    %v479 = vmul.f32 %v436, %v477
    %v480 = vadd.f32 %v479, %v440
    %v482 = vrot.slane %v475, 6
    %v484 = vmul.f32 %v421, %v482
    %v485 = vadd.f32 %v484, %v428
    %v486 = vrot.slane %v405, 2
    %v488 = vadd.f32 %v485, %v486
    %v490 = vrot.slane %v480, 6
    %v492 = vmul.f32 %v437, %v490
    %v493 = vadd.f32 %v492, %v443
    %v495 = vrot.slane %v488, 6
    %v497 = vmul.f32 %v423, %v495
    %v498 = vadd.f32 %v497, %v429
    %v499 = vadd.f32 %v498, %v405
    %v501 = vrot.slane %v493, 6
    %v503 = vmul.f32 %v437, %v501
    %v504 = vadd.f32 %v503, %v443
    %v506 = vrot.slane %v499, 6
    %v508 = vmul.f32 %v423, %v506
    %v509 = vadd.f32 %v508, %v429
    %v510 = vadd.f32 %v509, %v460
    %v512 = vrot.slane %v504, 6
    %v514 = vmul.f32 %v437, %v512
    %v515 = vadd.f32 %v514, %v443
    %v517 = vrot.slane %v510, 6
    %v519 = vmul.f32 %v423, %v517
    %v520 = vadd.f32 %v519, %v429
    %v521 = vadd.f32 %v520, %v473
    %v523 = vrot.slane %v515, 6
    %v525 = vmul.f32 %v437, %v523
    %v526 = vadd.f32 %v525, %v443
    %v528 = vrot.slane %v521, 6
    %v530 = vmul.f32 %v423, %v528
    %v531 = vadd.f32 %v530, %v429
    %v532 = vadd.f32 %v531, %v486
    %v533 = vsel %vm166, %v445, %v453
    %v534 = vsel %vm168, %v533, %v467
    %v535 = vsel %vm170, %v534, %v480
    %v536 = vsel %vm166, %v493, %v504
    %v537 = vsel %vm168, %v536, %v515
    %v538 = vsel %vm170, %v537, %v526
    %v539 = vsel %vm166, %v448, %v462
    %v540 = vsel %vm168, %v539, %v475
    %v541 = vsel %vm170, %v540, %v488
    %v542 = vsel %vm166, %v499, %v510
    %v543 = vsel %vm168, %v542, %v521
    %v544 = vsel %vm170, %v543, %v532
    %v545 = vadd.f32 %v535, 1e-08
    %v546 = vadd.f32 %v538, 1e-08
    %v547 = vrcp.pop %v545
    %v548 = vrcp.pop %v546
    %550 = vset.pattern.permute.xlu0 0
    %551 = vperm.xlu0 %550, %v547
    %v552 = vpop.permute.xlu0 %551
    %555 = vset.pattern.permute.xlu0 0
    %556 = vperm.xlu0 %555, %v548
    %v557 = vpop.permute.xlu0 %556
    %v559 = vmul.f32 %v541, %v552
    %v560 = vmul.f32 %v544, %v557
    %v561 = vsel %vm61, %v559, 0.0
    %562 = vadd.xlane.f32.xlu0 %v561
    %v563 = vpop.xlane.xlu0 %562
    %v564 = vsel %vm61, %v560, 0.0
    %565 = vadd.xlane.f32.xlu0 %v564
    %v566 = vpop.xlane.xlu0 %565
    %v567 = vmul.f32 %v563, %v68
    %v568 = vmul.f32 %v566, %v68
    %v569 = vsub.f32 %v559, %v567
    %v570 = vsub.f32 %v560, %v568
    %v571 = vmul.f32 %v569, %v569
    %v572 = vmul.f32 %v570, %v570
    %v573 = vsel %vm61, %v571, 0.0
    %574 = vadd.xlane.f32.xlu0 %v573
    %v575 = vpop.xlane.xlu0 %574
    %v576 = vsel %vm61, %v572, 0.0
    %577 = vadd.xlane.f32.xlu0 %v576
    %v578 = vpop.xlane.xlu0 %577
    %v579 = vmul.f32 %v575, %v68
    %v580 = vmul.f32 %v578, %v68
    %v581 = vadd.f32 %v579, 1e-05
    %v582 = vadd.f32 %v580, 1e-05
    %v583 = vrsqrt.pop %v581
    %v584 = vrsqrt.pop %v582
    %v585 = vmul.f32 %v569, %v583
    %v586 = vmul.f32 %v570, %v584
    %v587 = vlaneseq
    %v588 = vshrl.u32 %v587, 7
    %v589 = vsub.s32 2, %v588
    %v590 = vrot.slane %v393, %v589
    %v591 = vmul.f32 %v585, %v590
    %v592 = vmul.f32 %v586, %v590
    %v593 = vlaneseq
    %v594 = vshrl.u32 %v593, 7
    %v595 = vsub.s32 3, %v594
    %v596 = vrot.slane %v393, %v595
    %v597 = vadd.f32 %v591, %v596
    %v598 = vadd.f32 %v592, %v596
    %s599 = scalar_lea.vmem %s3, 64
    %v600 = vld [vmem:[%s599] sm:$0xff]
    %v601 = vld [vmem:[%s599 + $0x8] sm:$0xff]
    %v602 = vld [vmem:[%s599 + $0x10] sm:$0xff]
    %v603 = vld [vmem:[%s599 + $0x18] sm:$0xff]
    %v604 = vld [vmem:[%s599 + $0x20] sm:$0xff]
    %v605 = vld [vmem:[%s599 + $0x28] sm:$0xff]
    %v606 = vld [vmem:[%s599 + $0x30] sm:$0xff]
    %v607 = vld [vmem:[%s599 + $0x38] sm:$0xff]
    %v609 = vsel %vm61, %v597, 0
    %v612 = vsel %vm61, %v598, 0
    %614 = vmatprep.subr.mxu0 0.0
    %615 = vmatpush1.msra.mxu0 0.0
    %616 = vmatprep.subr.mxu0 0.0
    %617 = vmatpush1.msra.mxu0 0.0
    %618 = vmatprep.subr.mxu0 0.0
    %619 = vmatpush1.msra.mxu0 0.0
    %620 = vmatprep.subr.mxu0 0.0
    %621 = vmatpush1.msra.mxu0 0.0
    %622 = vmatprep.subr.mxu0 0.0
    %623 = vmatpush1.msra.mxu0 0.0
    %624 = vmatprep.subr.mxu0 0.0
    %625 = vmatpush1.msra.mxu0 0.0
    %626 = vmatprep.subr.mxu0 0.0
    %627 = vmatpush1.msra.mxu0 0.0
    %628 = vmatprep.subr.mxu0 0.0
    %629 = vmatpush1.msra.mxu0 0.0
    %630 = vmatprep.subr.mxu0 0.0
    %631 = vmatpush1.msra.mxu0 0.0
    %632 = vmatprep.subr.mxu0 0.0
    %633 = vmatpush1.msra.mxu0 0.0
    %634 = vmatprep.subr.mxu0 0.0
    %635 = vmatpush1.msra.mxu0 0.0
    %636 = vmatprep.subr.mxu0 0.0
    %637 = vmatpush1.msra.mxu0 0.0
    %638 = vmatprep.subr.mxu0 %v607
    %639 = vmatpush1.msra.mxu0 %v606
    %640 = vmatprep.subr.mxu0 %v605
    %641 = vmatpush1.msra.mxu0 %v604
    %642 = vmatprep.subr.mxu0 %v603
    %643 = vmatpush1.msra.mxu0 %v602
    %644 = vmatprep.subr.mxu0 %v601
    %645 = vmatpush1.msra.mxu0 %v600
    %646 = vmatprep.subr.mxu0 0.0
    %647 = vmatpush2.msra.mxu0 0.0
    %648 = vmatprep.subr.mxu0 0.0
    %649 = vmatpush2.msra.mxu0 0.0
    %650 = vmatprep.subr.mxu0 0.0
    %651 = vmatpush2.msra.mxu0 0.0
    %652 = vmatprep.subr.mxu0 0.0
    %653 = vmatpush2.msra.mxu0 0.0
    %654 = vmatprep.subr.mxu0 0.0
    %655 = vmatpush2.msra.mxu0 0.0
    %656 = vmatprep.subr.mxu0 0.0
    %657 = vmatpush2.msra.mxu0 0.0
    %658 = vmatprep.subr.mxu0 0.0
    %659 = vmatpush2.msra.mxu0 0.0
    %660 = vmatprep.subr.mxu0 0.0
    %661 = vmatpush2.msra.mxu0 0.0
    %662 = vmatprep.subr.mxu0 0.0
    %663 = vmatpush2.msra.mxu0 0.0
    %664 = vmatprep.subr.mxu0 0.0
    %665 = vmatpush2.msra.mxu0 0.0
    %666 = vmatprep.subr.mxu0 0.0
    %667 = vmatpush2.msra.mxu0 0.0
    %668 = vmatprep.subr.mxu0 0.0
    %669 = vmatpush2.msra.mxu0 0.0
    %670 = vmatprep.subr.mxu0 0.0
    %671 = vmatpush2.msra.mxu0 0.0
    %672 = vmatprep.subr.mxu0 0.0
    %673 = vmatpush2.msra.mxu0 0.0
    %674 = vmatprep.subr.mxu0 0.0
    %675 = vmatpush2.msra.mxu0 0.0
    %676 = vmatprep.subr.mxu0 0.0
    %677 = vmatpush2.msra.mxu0 0.0
    %678 = vmatprep.mubr.f32.mxu0 0.0
    %679 = vmatmul.mubr.f32.gmra.mxu0 %v609
    %v680 = vpop.f32.mrf.mxu0
    %v681 = vpop.f32.mrf.mxu0
    %682 = vmatprep.mubr.f32.mxu0 0.0
    %683 = vmatmul.mubr.f32.gmra.mxu0 %v612
    %v684 = vpop.f32.mrf.mxu0
    %v685 = vadd.f32 0.0, %v684
    %v686 = vpop.f32.mrf.mxu0
    %v687 = vadd.f32 0.0, %v686
    %688 = vdwg.mxu0
    %v689 = vlaneseq
    %v690 = vshrl.u32 %v689, 7
    %v691 = vsub.s32 6, %v690
    %v692 = vrot.slane %v393, %v691
    %v693 = vadd.f32 %v685, %v692
    %v694 = vxor.u32 %v693, 2147483648
    %v695 = vmul.f32 %v694, 1.442695
    %v696 = vpow.pop %v695
    %v697 = vadd.f32 %v696, 1.0
    %v698 = vrcp.pop %v697
    %v699 = vmul.f32 1.0, %v698
    %v700 = vlaneseq
    %v701 = vshrl.u32 %v700, 7
    %v702 = vsub.s32 7, %v701
    %v703 = vrot.slane %v393, %v702
    %v704 = vadd.f32 %v687, %v703
    %v705 = vmul.f32 %v699, %v704
    %v706 = vsel %vm61, %v705, 0.0
    %707 = vadd.xlane.f32.xlu0 %v706
    %v708 = vpop.xlane.xlu0 %707
    %v709 = vmul.f32 %v708, %v68
    %v710 = vsub.f32 %v705, %v709
    %v711 = vmul.f32 %v710, %v710
    %v712 = vsel %vm61, %v711, 0.0
    %713 = vadd.xlane.f32.xlu0 %v712
    %v714 = vpop.xlane.xlu0 %713
    %v715 = vmul.f32 %v714, %v68
    %v716 = vadd.f32 %v715, 1e-05
    %v717 = vrsqrt.pop %v716
    %v718 = vmul.f32 %v710, %v717
    %v719 = vlaneseq
    %v720 = vshrl.u32 %v719, 7
    %v721 = vsub.s32 4, %v720
    %v722 = vrot.slane %v393, %v721
    %v723 = vmul.f32 %v718, %v722
    %v724 = vlaneseq
    %v725 = vshrl.u32 %v724, 7
    %v726 = vsub.s32 5, %v725
    %v727 = vrot.slane %v393, %v726
    %v728 = vadd.f32 %v723, %v727
    %v729 = vadd.f32 %v391, %v728
    %v730 = vld [vmem:[%s4] sm:$0xff]
    %v731 = vld [vmem:[%s4 + $0x8] sm:$0xff]
    %v732 = vld [vmem:[%s4 + $0x10] sm:$0xff]
    %v733 = vld [vmem:[%s4 + $0x18] sm:$0xff]
    %v734 = vld [vmem:[%s4 + $0x20] sm:$0xff]
    %v735 = vlaneseq
    %v736 = vshrl.u32 %v735, 7
    %v737 = vsub.s32 0, %v736
    %v738 = vrot.slane %v734, %v737
    %v740 = vrot.slane %v729, 6
    %v741 = vsel %vm61, %v740, 0
    %743 = vmatprep.subr.mxu0 0.0
    %744 = vmatpush1.msra.mxu0 0.0
    %745 = vmatprep.subr.mxu0 0.0
    %746 = vmatpush1.msra.mxu0 0.0
    %747 = vmatprep.subr.mxu0 0.0
    %748 = vmatpush1.msra.mxu0 0.0
    %749 = vmatprep.subr.mxu0 0.0
    %750 = vmatpush1.msra.mxu0 0.0
    %751 = vmatprep.subr.mxu0 0.0
    %752 = vmatpush1.msra.mxu0 0.0
    %753 = vmatprep.subr.mxu0 0.0
    %754 = vmatpush1.msra.mxu0 0.0
    %755 = vmatprep.subr.mxu0 0.0
    %756 = vmatpush1.msra.mxu0 0.0
    %757 = vmatprep.subr.mxu0 0.0
    %758 = vmatpush1.msra.mxu0 0.0
    %759 = vmatprep.subr.mxu0 0.0
    %760 = vmatpush1.msra.mxu0 0.0
    %761 = vmatprep.subr.mxu0 0.0
    %762 = vmatpush1.msra.mxu0 0.0
    %763 = vmatprep.subr.mxu0 0.0
    %764 = vmatpush1.msra.mxu0 0.0
    %765 = vmatprep.subr.mxu0 0.0
    %766 = vmatpush1.msra.mxu0 0.0
    %767 = vmatprep.subr.mxu0 0.0
    %768 = vmatpush1.msra.mxu0 %v733
    %769 = vmatprep.subr.mxu0 0.0
    %770 = vmatpush1.msra.mxu0 %v732
    %771 = vmatprep.subr.mxu0 0.0
    %772 = vmatpush1.msra.mxu0 %v731
    %773 = vmatprep.subr.mxu0 0.0
    %774 = vmatpush1.msra.mxu0 %v730
    %775 = vmatprep.subr.mxu0 0.0
    %776 = vmatpush2.msra.mxu0 0.0
    %777 = vmatprep.subr.mxu0 0.0
    %778 = vmatpush2.msra.mxu0 0.0
    %779 = vmatprep.subr.mxu0 0.0
    %780 = vmatpush2.msra.mxu0 0.0
    %781 = vmatprep.subr.mxu0 0.0
    %782 = vmatpush2.msra.mxu0 0.0
    %783 = vmatprep.subr.mxu0 0.0
    %784 = vmatpush2.msra.mxu0 0.0
    %785 = vmatprep.subr.mxu0 0.0
    %786 = vmatpush2.msra.mxu0 0.0
    %787 = vmatprep.subr.mxu0 0.0
    %788 = vmatpush2.msra.mxu0 0.0
    %789 = vmatprep.subr.mxu0 0.0
    %790 = vmatpush2.msra.mxu0 0.0
    %791 = vmatprep.subr.mxu0 0.0
    %792 = vmatpush2.msra.mxu0 0.0
    %793 = vmatprep.subr.mxu0 0.0
    %794 = vmatpush2.msra.mxu0 0.0
    %795 = vmatprep.subr.mxu0 0.0
    %796 = vmatpush2.msra.mxu0 0.0
    %797 = vmatprep.subr.mxu0 0.0
    %798 = vmatpush2.msra.mxu0 0.0
    %799 = vmatprep.subr.mxu0 0.0
    %800 = vmatpush2.msra.mxu0 0.0
    %801 = vmatprep.subr.mxu0 0.0
    %802 = vmatpush2.msra.mxu0 0.0
    %803 = vmatprep.subr.mxu0 0.0
    %804 = vmatpush2.msra.mxu0 0.0
    %805 = vmatprep.subr.mxu0 0.0
    %806 = vmatpush2.msra.mxu0 0.0
    %807 = vmatprep.mubr.f32.mxu0 0.0
    %808 = vmatmul.mubr.f32.gmra.mxu0 %v741
    %v809 = vpop.f32.mrf.mxu0
    %v810 = vadd.f32 %v738, %v809
    %v811 = vpop.f32.mrf.mxu0
    %812 = vdwg.mxu0
    %813 = vst [vmem:[#allocation2] sm:$0x3] %v810
    // Predicated region
    $region22: #{attention_stream_decoder.1} parent=1 // pred_check
      _
    $region23: #{attention_stream_decoder.1} parent=1 // pred_check_branch
      %815 = sbr.rel (0) target = $region25
    $region24: #{attention_stream_decoder.1} parent=1 // pred_region
      %s817 = ssub.s32 32, 32
      %818 = vsyncadd [#allocation3], %s817
      %s820 = sshll.u32 [#allocation2], 4
      %s821 = int_to_ptr.vmem [resolvable:$true] %s820
      %823 = dma.vmem_to_hbm [thread:$0]  %s821, 32, %s5, [#allocation3]
    $region25: #{attention_stream_decoder.1} parent=1 // pred_fallthru
      _
    // Predicated region
    $region26: #{attention_stream_decoder.1} parent=1 // pred_check
      _
    $region27: #{attention_stream_decoder.1} parent=1 // pred_check_branch
      %825 = sbr.rel (0) target = $region29
    $region28: #{attention_stream_decoder.1} parent=1 // pred_region
      %826 = dma.done [#allocation3], 32
    $region29: #{attention_stream_decoder.1} parent=1 // pred_fallthru
      _
    %827 = vsyncpa [#allocation3], 1

</llo_original>
